<compile_context>
chip_gen: v7x
topology: tpu7x:2x2x1
jax: 0.10.0
libtpu: 0.0.40
codegen_flags: <defaults>
</compile_context>

<pallas_src>
import jax
import jax.numpy as jnp
from jax.experimental import pallas as pl
from jax.experimental.pallas import tpu as pltpu

IN_DIM = 784
IN_PAD = 896          # 7 * 128 -> lane-dense feature axis
HID_DIM = 32
EPS = 1e-5


def _round_up(n, m):
    return ((n + m - 1) // m) * m


def normalize_forward(x, w1, b1, w2, b2, *, tm_max=1024):
    """x: [B, 784]; w1: [784, 32]; b1: [1, 32]; w2: [32, 784]; b2: [1, 784]."""
    B = x.shape[0]
    TM = min(tm_max, _round_up(B, 8))
    grid = (pl.cdiv(B, TM),)

    # ---- wrapper-side layout plumbing: lane-dense padding 784 -> 896 -------------
    pad_f = IN_PAD - IN_DIM
    xp = jnp.pad(x, ((0, 0), (0, pad_f)))
    w1p = jnp.pad(w1, ((0, pad_f), (0, 0)))     # zero rows -> dot result unchanged
    w2p = jnp.pad(w2, ((0, 0), (0, pad_f)))     # zero cols -> sliced off at the end
    b2p = jnp.pad(b2, ((0, 0), (0, pad_f)))

    # ---- pass 1: fc1 + ReLU + exact batch-stat accumulation ----------------------
    def fc1_stats_kernel(x_ref, w1_ref, b1_ref, h_ref, stats_ref):
        i = pl.program_id(0)

        @pl.when(i == 0)
        def _():
            stats_ref[...] = jnp.zeros_like(stats_ref)

        h = jnp.dot(x_ref[...], w1_ref[...],
                    preferred_element_type=jnp.float32) + b1_ref[...]
        h = jnp.maximum(h, 0.0)
        h_ref[...] = h

        # mask rows past the true batch size (possible partial last tile)
        row = i * TM + jax.lax.broadcasted_iota(jnp.int32, h.shape, 0)
        hm = jnp.where(row < B, h, 0.0)
        stats_ref[...] += jnp.concatenate(
            [jnp.sum(hm, axis=0, keepdims=True),
             jnp.sum(hm * hm, axis=0, keepdims=True)], axis=0)

    h, stats = pl.pallas_call(
        fc1_stats_kernel,
        out_shape=(jax.ShapeDtypeStruct((B, HID_DIM), jnp.float32),
                   jax.ShapeDtypeStruct((2, HID_DIM), jnp.float32)),
        grid=grid,
        in_specs=[
            pl.BlockSpec((TM, IN_PAD), lambda i: (i, 0)),
            pl.BlockSpec((IN_PAD, HID_DIM), lambda i: (0, 0)),   # resident
            pl.BlockSpec((1, HID_DIM), lambda i: (0, 0)),        # resident
        ],
        out_specs=(
            pl.BlockSpec((TM, HID_DIM), lambda i: (i, 0)),
            pl.BlockSpec((2, HID_DIM), lambda i: (0, 0)),        # accumulator
        ),
        compiler_params=pltpu.CompilerParams(
            dimension_semantics=("arbitrary",)),                 # accumulator axis
    )(xp, w1p, b1)

    # ---- tiny [1,32] combine outside the kernel (exact full-batch statistics) ----
    mean = stats[0:1] / B
    var = jnp.maximum(stats[1:2] / B - mean * mean, 0.0)   # biased var (training mode)
    inv_std = jax.lax.rsqrt(var + EPS)

    # ---- pass 2: normalize + fc2 + sigmoid (fully parallel over batch tiles) -----
    def bn_fc2_kernel(h_ref, mean_ref, inv_ref, w2_ref, b2_ref, o_ref):
        hn = (h_ref[...] - mean_ref[...]) * inv_ref[...]
        y = jnp.dot(hn, w2_ref[...],
                    preferred_element_type=jnp.float32) + b2_ref[...]
        o_ref[...] = jax.nn.sigmoid(y)

    out_p = pl.pallas_call(
        bn_fc2_kernel,
        out_shape=jax.ShapeDtypeStruct((B, IN_PAD), jnp.float32),
        grid=grid,
        in_specs=[
            pl.BlockSpec((TM, HID_DIM), lambda i: (i, 0)),
            pl.BlockSpec((1, HID_DIM), lambda i: (0, 0)),
            pl.BlockSpec((1, HID_DIM), lambda i: (0, 0)),
            pl.BlockSpec((HID_DIM, IN_PAD), lambda i: (0, 0)),   # resident
            pl.BlockSpec((1, IN_PAD), lambda i: (0, 0)),         # resident
        ],
        out_specs=pl.BlockSpec((TM, IN_PAD), lambda i: (i, 0)),
        compiler_params=pltpu.CompilerParams(
            dimension_semantics=("parallel",)),                  # megacore-friendly
    )(h, mean, inv_std, w2p, b2p)

    return out_p[:, :IN_DIM]


def init_params(key):
    k1, k2, k3, k4 = jax.random.split(key, 4)
    # Mirrors PyTorch Linear's U(-1/sqrt(fan_in), 1/sqrt(fan_in)) init.
    bound1 = 1.0 / jnp.sqrt(IN_DIM)
    bound2 = 1.0 / jnp.sqrt(HID_DIM)
    w1 = jax.random.uniform(k1, (IN_DIM, HID_DIM), jnp.float32, -bound1, bound1)
    b1 = jax.random.uniform(k2, (1, HID_DIM), jnp.float32, -bound1, bound1)
    w2 = jax.random.uniform(k3, (HID_DIM, IN_DIM), jnp.float32, -bound2, bound2)
    b2 = jax.random.uniform(k4, (1, IN_DIM), jnp.float32, -bound2, bound2)
    return w1, b1, w2, b2


def _reference(x, w1, b1, w2, b2):
    hi = jax.lax.Precision.HIGHEST
    h = jnp.maximum(jnp.dot(x, w1, precision=hi) + b1, 0.0)
    mean = jnp.mean(h, axis=0, keepdims=True)
    var = jnp.mean((h - mean) ** 2, axis=0, keepdims=True)
    hn = (h - mean) * jax.lax.rsqrt(var + EPS)
    return jax.nn.sigmoid(jnp.dot(hn, w2, precision=hi) + b2)


if __name__ == "__main__":
    key = jax.random.PRNGKey(0)
    kx, kp, kx2 = jax.random.split(key, 3)

    B = 8
    x = jax.random.uniform(kx, (B, IN_DIM), jnp.float32)   # MNIST-like flattened input
    w1, b1, w2, b2 = init_params(kp)

    out = normalize_forward(x, w1, b1, w2, b2)
    jax.block_until_ready(out)
    assert out.shape == (B, IN_DIM) and out.dtype == jnp.float32
    assert float(jnp.max(jnp.abs(out - _reference(x, w1, b1, w2, b2)))) < 1e-4

    # Exercise the multi-tile grid path: partial last tile + cross-tile BN stats.
    B2 = 300
    x2 = jax.random.uniform(kx2, (B2, IN_DIM), jnp.float32)
    out2 = normalize_forward(x2, w1, b1, w2, b2, tm_max=128)
    jax.block_until_ready(out2)
    assert float(jnp.max(jnp.abs(out2 - _reference(x2, w1, b1, w2, b2)))) < 1e-4

    print("KERNEL_OK")
</pallas_src>

<mosaic_0001>
module attributes {stable_mosaic.version = 11 : i64} {
  func.func @fc1_stats_kernel(%arg0: i32, %arg1: memref<8x896xf32, #tpu.memory_space<vmem>>, %arg2: memref<896x32xf32, #tpu.memory_space<vmem>>, %arg3: memref<1x32xf32, #tpu.memory_space<vmem>>, %arg4: memref<8x32xf32, #tpu.memory_space<vmem>>, %arg5: memref<2x32xf32, #tpu.memory_space<vmem>>) attributes {dimension_semantics = [#tpu.dimension_semantics<arbitrary>], iteration_bounds = array<i64: 1>, scalar_prefetch = 0 : i64, scratch_operands = 0 : i64, tpu.core_type = #tpu.core_type<tc>, window_params = [{transform_indices = @transform_0, window_bounds = array<i64: 8, 896>}, {pipeline_mode = #tpu.pipeline_mode<synchronous>, transform_indices = @transform_1, window_bounds = array<i64: 896, 32>}, {pipeline_mode = #tpu.pipeline_mode<synchronous>, transform_indices = @transform_2, window_bounds = array<i64: 1, 32>}, {transform_indices = @transform_3, window_bounds = array<i64: 8, 32>}, {pipeline_mode = #tpu.pipeline_mode<synchronous>, transform_indices = @transform_4, window_bounds = array<i64: 2, 32>}]} {
    %c0_i32 = arith.constant 0 : i32
    %0 = arith.cmpi eq, %arg0, %c0_i32 : i32
    %1 = arith.extui %0 : i1 to i32
    %c0_i32_0 = arith.constant 0 : i32
    %2 = arith.cmpi ne, %1, %c0_i32_0 : i32
    scf.if %2 {
      %cst_17 = arith.constant 0.000000e+00 : f32
      %29 = vector.broadcast %cst_17 : f32 to vector<2x32xf32>
      %c0_18 = arith.constant 0 : index
      %c0_19 = arith.constant 0 : index
      %30 = vector.load %arg5[%c0_18, %c0_19] : memref<2x32xf32, #tpu.memory_space<vmem>>, vector<2x32xf32>
      tpu.vector_store %arg5[%c0_18, %c0_19], %29 {strides = array<i32>} : memref<2x32xf32, #tpu.memory_space<vmem>>, vector<2x32xf32>,
    } else {
    }
    %c0 = arith.constant 0 : index
    %c0_1 = arith.constant 0 : index
    %3 = vector.load %arg1[%c0, %c0_1] : memref<8x896xf32, #tpu.memory_space<vmem>>, vector<8x896xf32>
    %c0_2 = arith.constant 0 : index
    %c0_3 = arith.constant 0 : index
    %4 = vector.load %arg2[%c0_2, %c0_3] : memref<896x32xf32, #tpu.memory_space<vmem>>, vector<896x32xf32>
    %cst = arith.constant dense<0.000000e+00> : vector<8x32xf32>
    %5 = tpu.matmul %3, %4, %cst {dimension_numbers = #tpu.dot_dimension_numbers<[1], [0], [0], [1], [0, 0, 1, 1], [], []>} : vector<8x896xf32>, vector<896x32xf32>, vector<8x32xf32> -> vector<8x32xf32>
    %c0_4 = arith.constant 0 : index
    %c0_5 = arith.constant 0 : index
    %6 = vector.load %arg3[%c0_4, %c0_5] : memref<1x32xf32, #tpu.memory_space<vmem>>, vector<1x32xf32>
    %7 = vector.broadcast %6 : vector<1x32xf32> to vector<8x32xf32>
    %8 = arith.addf %5, %7 : vector<8x32xf32>
    %cst_6 = arith.constant 0.000000e+00 : f32
    %9 = vector.broadcast %cst_6 : f32 to vector<8x32xf32>
    %10 = arith.maximumf %8, %9 : vector<8x32xf32>
    %c0_7 = arith.constant 0 : index
    %c0_8 = arith.constant 0 : index
    %11 = vector.load %arg4[%c0_7, %c0_8] : memref<8x32xf32, #tpu.memory_space<vmem>>, vector<8x32xf32>
    tpu.vector_store %arg4[%c0_7, %c0_8], %10 {strides = array<i32>} : memref<8x32xf32, #tpu.memory_space<vmem>>, vector<8x32xf32>,
    %c8_i32 = arith.constant 8 : i32
    %12 = arith.muli %arg0, %c8_i32 : i32
    %13 = tpu.iota {dimensions = array<i32: 0>} : vector<8x32xi32>
    %14 = vector.broadcast %12 : i32 to vector<8x32xi32>
    %15 = arith.addi %14, %13 : vector<8x32xi32>
    %c8_i32_9 = arith.constant 8 : i32
    %16 = vector.broadcast %c8_i32_9 : i32 to vector<8x32xi32>
    %17 = arith.cmpi slt, %15, %16 : vector<8x32xi32>
    %cst_10 = arith.constant 0.000000e+00 : f32
    %18 = vector.broadcast %cst_10 : f32 to vector<8x32xf32>
    %19 = arith.select %17, %10, %18 : vector<8x32xi1>, vector<8x32xf32>
    %c0_11 = arith.constant 0 : index
    %c0_12 = arith.constant 0 : index
    %20 = vector.load %arg5[%c0_11, %c0_12] : memref<2x32xf32, #tpu.memory_space<vmem>>, vector<2x32xf32>
    %cst_13 = arith.constant dense<0.000000e+00> : vector<32xf32>
    %21 = vector.multi_reduction <add>, %19, %cst_13 [0] : vector<8x32xf32> to vector<32xf32>
    %22 = vector.shape_cast %21 : vector<32xf32> to vector<1x32xf32>
    %23 = arith.mulf %19, %19 : vector<8x32xf32>
    %cst_14 = arith.constant dense<0.000000e+00> : vector<32xf32>
    %24 = vector.multi_reduction <add>, %23, %cst_14 [0] : vector<8x32xf32> to vector<32xf32>
    %25 = vector.shape_cast %24 : vector<32xf32> to vector<1x32xf32>
    %26 = tpu.concatenate %22, %25 in 0 : vector<1x32xf32>, vector<1x32xf32> -> vector<2x32xf32>
    %27 = arith.addf %20, %26 : vector<2x32xf32>
    %c0_15 = arith.constant 0 : index
    %c0_16 = arith.constant 0 : index
    %28 = vector.load %arg5[%c0_15, %c0_16] : memref<2x32xf32, #tpu.memory_space<vmem>>, vector<2x32xf32>
    tpu.vector_store %arg5[%c0_15, %c0_16], %27 {strides = array<i32>} : memref<2x32xf32, #tpu.memory_space<vmem>>, vector<2x32xf32>,
    return
  }
  func.func @transform_0(%arg0: i32) -> (i32, i32) {
    %c0_i32 = arith.constant 0 : i32
    %c0_i32_0 = arith.constant 0 : i32
    return %arg0, %c0_i32 : i32, i32
  }
  func.func @transform_1(%arg0: i32) -> (i32, i32) {
    %c0_i32 = arith.constant 0 : i32
    %c0_i32_0 = arith.constant 0 : i32
    %c0_i32_1 = arith.constant 0 : i32
    return %c0_i32, %c0_i32_0 : i32, i32
  }
  func.func @transform_2(%arg0: i32) -> (i32, i32) {
    %c0_i32 = arith.constant 0 : i32
    %c0_i32_0 = arith.constant 0 : i32
    %c0_i32_1 = arith.constant 0 : i32
    return %c0_i32, %c0_i32_0 : i32, i32
  }
  func.func @transform_3(%arg0: i32) -> (i32, i32) {
    %c0_i32 = arith.constant 0 : i32
    %c0_i32_0 = arith.constant 0 : i32
    return %arg0, %c0_i32 : i32, i32
  }
  func.func @transform_4(%arg0: i32) -> (i32, i32) {
    %c0_i32 = arith.constant 0 : i32
    %c0_i32_0 = arith.constant 0 : i32
    %c0_i32_1 = arith.constant 0 : i32
    return %c0_i32, %c0_i32_0 : i32, i32
  }
}

</mosaic_0001>

<llo_original>
// kernel: tpu_custom_call.1
$region0: #{tpu_custom_call.1}
  #allocation0 [shape = 'u32[]', space=smem, size = 0x4, offset = 0x4, fixed_abs, tag = 'smem constant byte address 0x4 - core index']
  #allocation1 [shape = 'u32[144,128]{1,0:T(1,128)}', space=vmem, size = 0x12000, scoped, tag = 'internal scratch']
  %s0 = inlined_call_operand.vmem [shape: f32[8,896], index: 0, kind: input, shape index: {}]
  %s1 = inlined_call_operand.vmem [shape: f32[896,32], index: 1, kind: input, shape index: {}]
  %s2 = inlined_call_operand.vmem [shape: f32[1,32], index: 2, kind: input, shape index: {}]
  %s3 = inlined_call_operand.hbm [shape: f32[8,32], index: 3, kind: output, shape index: {0}]
  %s4 = inlined_call_operand.hbm [shape: f32[2,32], index: 4, kind: output, shape index: {1}]
  %5 = xla_tuple %s3, %s4
  %s6 = sld [smem:[#allocation0]]
  $region34: #{tpu_custom_call.1} parent=0
    _
  %s8 = ssub.s32 1, %s6
  %s9 = scalar_select 0, %s8, %s6
  $region1: #{tpu_custom_call.1} parent=0
    #allocation2 [shape = 'u8[4096]{0}', space=vmem, size = 0x1000, scoped, tag = 'output window, operand 0, single buffered']
    #allocation3 [shape = 's32[1]{0}', space=sflag, size = 0x4, scoped, tag = 'scoped memory for tpu_custom_call.1']
    #allocation4 [shape = 'u8[1024]{0}', space=vmem, size = 0x400, scoped, tag = 'output window, operand 1, single buffered']
    #allocation5 [shape = 's32[1]{0}', space=sflag, size = 0x4, scoped, tag = 'scoped memory for tpu_custom_call.1']
    %10 = vsyncpa [#allocation3], 0
    %11 = vsyncpa [#allocation5], 0
    // Predicated region
    $region2: #{tpu_custom_call.1} parent=1 // pred_check
      _
    $region3: #{tpu_custom_call.1} parent=1 // pred_check_branch
      %13 = sbr.rel (0) target = $region5
    $region4: #{tpu_custom_call.1} parent=1 // pred_region
      _
    $region5: #{tpu_custom_call.1} parent=1 // pred_fallthru
      _
    // Predicated region
    $region6: #{tpu_custom_call.1} parent=1 // pred_check
      _
    $region7: #{tpu_custom_call.1} parent=1 // pred_check_branch
      %15 = sbr.rel (0) target = $region9
    $region8: #{tpu_custom_call.1} parent=1 // pred_region
      _
    $region9: #{tpu_custom_call.1} parent=1 // pred_fallthru
      _
    // Predicated region
    $region10: #{tpu_custom_call.1} parent=1 // pred_check
      _
    $region11: #{tpu_custom_call.1} parent=1 // pred_check_branch
      %17 = sbr.rel (0) target = $region13
    $region12: #{tpu_custom_call.1} parent=1 // pred_region
      _
    $region13: #{tpu_custom_call.1} parent=1 // pred_fallthru
      _
    %p18 = scmp.eq.s32.totalorder 0, 0
    // Predicated region
    $region14: #{tpu_custom_call.1} parent=1 // pred_check
      %p19 = pneg %p18
    $region15: #{tpu_custom_call.1} parent=1 // pred_check_branch
      %21 = sbr.rel (%p19) target = $region17
    $region16: #{tpu_custom_call.1} parent=1 // pred_region
      %vm22 = vcmask 254976
      %23 = vst.msk [vmem:[#allocation4] sm:$0x3] %vm22, 0.0
    $region17: #{tpu_custom_call.1} parent=1 // pred_fallthru
      _
    %v24 = vld [vmem:[%s0] sm:$0xff]
    %v25 = vld [vmem:[%s0 + $0x8] sm:$0xff]
    %v26 = vld [vmem:[%s0 + $0x10] sm:$0xff]
    %v27 = vld [vmem:[%s0 + $0x18] sm:$0xff]
    %v28 = vld [vmem:[%s0 + $0x20] sm:$0xff]
    %v29 = vld [vmem:[%s0 + $0x28] sm:$0xff]
    %v30 = vld [vmem:[%s0 + $0x30] sm:$0xff]
    %v31 = vld [vmem:[%s1] sm:$0xff]
    %v32 = vld [vmem:[%s1 + $0x8] sm:$0xff]
    %v33 = vld [vmem:[%s1 + $0x10] sm:$0xff]
    %v34 = vld [vmem:[%s1 + $0x18] sm:$0xff]
    %v35 = vld [vmem:[%s1 + $0x20] sm:$0xff]
    %v36 = vld [vmem:[%s1 + $0x28] sm:$0xff]
    %v37 = vld [vmem:[%s1 + $0x30] sm:$0xff]
    %v38 = vld [vmem:[%s1 + $0x38] sm:$0xff]
    %v39 = vld [vmem:[%s1 + $0x40] sm:$0xff]
    %v40 = vld [vmem:[%s1 + $0x48] sm:$0xff]
    %v41 = vld [vmem:[%s1 + $0x50] sm:$0xff]
    %v42 = vld [vmem:[%s1 + $0x58] sm:$0xff]
    %v43 = vld [vmem:[%s1 + $0x60] sm:$0xff]
    %v44 = vld [vmem:[%s1 + $0x68] sm:$0xff]
    %v45 = vld [vmem:[%s1 + $0x70] sm:$0xff]
    %v46 = vld [vmem:[%s1 + $0x78] sm:$0xff]
    %v47 = vld [vmem:[%s1 + $0x80] sm:$0xff]
    %v48 = vld [vmem:[%s1 + $0x88] sm:$0xff]
    %v49 = vld [vmem:[%s1 + $0x90] sm:$0xff]
    %v50 = vld [vmem:[%s1 + $0x98] sm:$0xff]
    %v51 = vld [vmem:[%s1 + $0xa0] sm:$0xff]
    %v52 = vld [vmem:[%s1 + $0xa8] sm:$0xff]
    %v53 = vld [vmem:[%s1 + $0xb0] sm:$0xff]
    %v54 = vld [vmem:[%s1 + $0xb8] sm:$0xff]
    %v55 = vld [vmem:[%s1 + $0xc0] sm:$0xff]
    %v56 = vld [vmem:[%s1 + $0xc8] sm:$0xff]
    %v57 = vld [vmem:[%s1 + $0xd0] sm:$0xff]
    %v58 = vld [vmem:[%s1 + $0xd8] sm:$0xff]
    %v59 = vld [vmem:[%s1 + $0xe0] sm:$0xff]
    %v60 = vld [vmem:[%s1 + $0xe8] sm:$0xff]
    %v61 = vld [vmem:[%s1 + $0xf0] sm:$0xff]
    %v62 = vld [vmem:[%s1 + $0xf8] sm:$0xff]
    %v63 = vld [vmem:[%s1 + $0x100] sm:$0xff]
    %v64 = vld [vmem:[%s1 + $0x108] sm:$0xff]
    %v65 = vld [vmem:[%s1 + $0x110] sm:$0xff]
    %v66 = vld [vmem:[%s1 + $0x118] sm:$0xff]
    %v67 = vld [vmem:[%s1 + $0x120] sm:$0xff]
    %v68 = vld [vmem:[%s1 + $0x128] sm:$0xff]
    %v69 = vld [vmem:[%s1 + $0x130] sm:$0xff]
    %v70 = vld [vmem:[%s1 + $0x138] sm:$0xff]
    %v71 = vld [vmem:[%s1 + $0x140] sm:$0xff]
    %v72 = vld [vmem:[%s1 + $0x148] sm:$0xff]
    %v73 = vld [vmem:[%s1 + $0x150] sm:$0xff]
    %v74 = vld [vmem:[%s1 + $0x158] sm:$0xff]
    %v75 = vld [vmem:[%s1 + $0x160] sm:$0xff]
    %v76 = vld [vmem:[%s1 + $0x168] sm:$0xff]
    %v77 = vld [vmem:[%s1 + $0x170] sm:$0xff]
    %v78 = vld [vmem:[%s1 + $0x178] sm:$0xff]
    %v79 = vld [vmem:[%s1 + $0x180] sm:$0xff]
    %v80 = vld [vmem:[%s1 + $0x188] sm:$0xff]
    %v81 = vld [vmem:[%s1 + $0x190] sm:$0xff]
    %v82 = vld [vmem:[%s1 + $0x198] sm:$0xff]
    %v83 = vld [vmem:[%s1 + $0x1a0] sm:$0xff]
    %v84 = vld [vmem:[%s1 + $0x1a8] sm:$0xff]
    %v85 = vld [vmem:[%s1 + $0x1b0] sm:$0xff]
    %v86 = vld [vmem:[%s1 + $0x1b8] sm:$0xff]
    %v87 = vld [vmem:[%s1 + $0x1c0] sm:$0xff]
    %v88 = vld [vmem:[%s1 + $0x1c8] sm:$0xff]
    %v89 = vld [vmem:[%s1 + $0x1d0] sm:$0xff]
    %v90 = vld [vmem:[%s1 + $0x1d8] sm:$0xff]
    %v91 = vld [vmem:[%s1 + $0x1e0] sm:$0xff]
    %v92 = vld [vmem:[%s1 + $0x1e8] sm:$0xff]
    %v93 = vld [vmem:[%s1 + $0x1f0] sm:$0xff]
    %v94 = vld [vmem:[%s1 + $0x1f8] sm:$0xff]
    %v95 = vld [vmem:[%s1 + $0x200] sm:$0xff]
    %v96 = vld [vmem:[%s1 + $0x208] sm:$0xff]
    %v97 = vld [vmem:[%s1 + $0x210] sm:$0xff]
    %v98 = vld [vmem:[%s1 + $0x218] sm:$0xff]
    %v99 = vld [vmem:[%s1 + $0x220] sm:$0xff]
    %v100 = vld [vmem:[%s1 + $0x228] sm:$0xff]
    %v101 = vld [vmem:[%s1 + $0x230] sm:$0xff]
    %v102 = vld [vmem:[%s1 + $0x238] sm:$0xff]
    %v103 = vld [vmem:[%s1 + $0x240] sm:$0xff]
    %v104 = vld [vmem:[%s1 + $0x248] sm:$0xff]
    %v105 = vld [vmem:[%s1 + $0x250] sm:$0xff]
    %v106 = vld [vmem:[%s1 + $0x258] sm:$0xff]
    %v107 = vld [vmem:[%s1 + $0x260] sm:$0xff]
    %v108 = vld [vmem:[%s1 + $0x268] sm:$0xff]
    %v109 = vld [vmem:[%s1 + $0x270] sm:$0xff]
    %v110 = vld [vmem:[%s1 + $0x278] sm:$0xff]
    %v111 = vld [vmem:[%s1 + $0x280] sm:$0xff]
    %v112 = vld [vmem:[%s1 + $0x288] sm:$0xff]
    %v113 = vld [vmem:[%s1 + $0x290] sm:$0xff]
    %v114 = vld [vmem:[%s1 + $0x298] sm:$0xff]
    %v115 = vld [vmem:[%s1 + $0x2a0] sm:$0xff]
    %v116 = vld [vmem:[%s1 + $0x2a8] sm:$0xff]
    %v117 = vld [vmem:[%s1 + $0x2b0] sm:$0xff]
    %v118 = vld [vmem:[%s1 + $0x2b8] sm:$0xff]
    %v119 = vld [vmem:[%s1 + $0x2c0] sm:$0xff]
    %v120 = vld [vmem:[%s1 + $0x2c8] sm:$0xff]
    %v121 = vld [vmem:[%s1 + $0x2d0] sm:$0xff]
    %v122 = vld [vmem:[%s1 + $0x2d8] sm:$0xff]
    %v123 = vld [vmem:[%s1 + $0x2e0] sm:$0xff]
    %v124 = vld [vmem:[%s1 + $0x2e8] sm:$0xff]
    %v125 = vld [vmem:[%s1 + $0x2f0] sm:$0xff]
    %v126 = vld [vmem:[%s1 + $0x2f8] sm:$0xff]
    %v127 = vld [vmem:[%s1 + $0x300] sm:$0xff]
    %v128 = vld [vmem:[%s1 + $0x308] sm:$0xff]
    %v129 = vld [vmem:[%s1 + $0x310] sm:$0xff]
    %v130 = vld [vmem:[%s1 + $0x318] sm:$0xff]
    %v131 = vld [vmem:[%s1 + $0x320] sm:$0xff]
    %v132 = vld [vmem:[%s1 + $0x328] sm:$0xff]
    %v133 = vld [vmem:[%s1 + $0x330] sm:$0xff]
    %v134 = vld [vmem:[%s1 + $0x338] sm:$0xff]
    %v135 = vld [vmem:[%s1 + $0x340] sm:$0xff]
    %v136 = vld [vmem:[%s1 + $0x348] sm:$0xff]
    %v137 = vld [vmem:[%s1 + $0x350] sm:$0xff]
    %v138 = vld [vmem:[%s1 + $0x358] sm:$0xff]
    %v139 = vld [vmem:[%s1 + $0x360] sm:$0xff]
    %v140 = vld [vmem:[%s1 + $0x368] sm:$0xff]
    %v141 = vld [vmem:[%s1 + $0x370] sm:$0xff]
    %v142 = vld [vmem:[%s1 + $0x378] sm:$0xff]
    %v143 = vld [vmem:[%s2] sm:$0x1]
    %v145 = vlaneseq
    %v146 = vshrl.u32 %v145, 7
    %v147 = vsub.s32 0, %v146
    %v148 = vrot.slane %v143, %v147
    %150 = vmatprep.subr.mxu0 0.0
    %151 = vmatpush1.msra.mxu0 %v31
    %152 = vmatprep.subr.mxu0 0.0
    %153 = vmatpush1.msra.mxu0 %v32
    %154 = vmatprep.subr.mxu0 0.0
    %155 = vmatpush1.msra.mxu0 %v33
    %156 = vmatprep.subr.mxu0 0.0
    %157 = vmatpush1.msra.mxu0 %v34
    %158 = vmatprep.subr.mxu0 0.0
    %159 = vmatpush1.msra.mxu0 %v35
    %160 = vmatprep.subr.mxu0 0.0
    %161 = vmatpush1.msra.mxu0 %v36
    %162 = vmatprep.subr.mxu0 0.0
    %163 = vmatpush1.msra.mxu0 %v37
    %164 = vmatprep.subr.mxu0 0.0
    %165 = vmatpush1.msra.mxu0 %v38
    %166 = vmatprep.subr.mxu0 0.0
    %167 = vmatpush1.msra.mxu0 %v39
    %168 = vmatprep.subr.mxu0 0.0
    %169 = vmatpush1.msra.mxu0 %v40
    %170 = vmatprep.subr.mxu0 0.0
    %171 = vmatpush1.msra.mxu0 %v41
    %172 = vmatprep.subr.mxu0 0.0
    %173 = vmatpush1.msra.mxu0 %v42
    %174 = vmatprep.subr.mxu0 0.0
    %175 = vmatpush1.msra.mxu0 %v43
    %176 = vmatprep.subr.mxu0 0.0
    %177 = vmatpush1.msra.mxu0 %v44
    %178 = vmatprep.subr.mxu0 0.0
    %179 = vmatpush1.msra.mxu0 %v45
    %180 = vmatprep.subr.mxu0 0.0
    %181 = vmatpush1.msra.mxu0 %v46
    %182 = vmatprep.subr.mxu0 0.0
    %183 = vmatpush1.msra.mxu0 %v47
    %184 = vmatprep.subr.mxu0 0.0
    %185 = vmatpush1.msra.mxu0 %v48
    %186 = vmatprep.subr.mxu0 0.0
    %187 = vmatpush1.msra.mxu0 %v49
    %188 = vmatprep.subr.mxu0 0.0
    %189 = vmatpush1.msra.mxu0 %v50
    %190 = vmatprep.subr.mxu0 0.0
    %191 = vmatpush1.msra.mxu0 %v51
    %192 = vmatprep.subr.mxu0 0.0
    %193 = vmatpush1.msra.mxu0 %v52
    %194 = vmatprep.subr.mxu0 0.0
    %195 = vmatpush1.msra.mxu0 %v53
    %196 = vmatprep.subr.mxu0 0.0
    %197 = vmatpush1.msra.mxu0 %v54
    %198 = vmatprep.subr.mxu0 0.0
    %199 = vmatpush1.msra.mxu0 %v55
    %200 = vmatprep.subr.mxu0 0.0
    %201 = vmatpush1.msra.mxu0 %v56
    %202 = vmatprep.subr.mxu0 0.0
    %203 = vmatpush1.msra.mxu0 %v57
    %204 = vmatprep.subr.mxu0 0.0
    %205 = vmatpush1.msra.mxu0 %v58
    %206 = vmatprep.subr.mxu0 0.0
    %207 = vmatpush1.msra.mxu0 %v59
    %208 = vmatprep.subr.mxu0 0.0
    %209 = vmatpush1.msra.mxu0 %v60
    %210 = vmatprep.subr.mxu0 0.0
    %211 = vmatpush1.msra.mxu0 %v61
    %212 = vmatprep.subr.mxu0 0.0
    %213 = vmatpush1.msra.mxu0 %v62
    %214 = vmatprep.mubr.f32.mxu0 %v25
    %215 = vmatmul.mubr.f32.gmra.mrb[0].mxu0 %v24
    %v216 = vpop.f32.mrb[0].mxu0
    %v217 = vadd.f32 %v148, %v216
    %v218 = vpop.f32.mrb[0].mxu0
    %219 = vdwg.mxu0
    %220 = vmatprep.subr.mxu0 0.0
    %221 = vmatpush1.msra.mxu0 %v63
    %222 = vmatprep.subr.mxu0 0.0
    %223 = vmatpush1.msra.mxu0 %v64
    %224 = vmatprep.subr.mxu0 0.0
    %225 = vmatpush1.msra.mxu0 %v65
    %226 = vmatprep.subr.mxu0 0.0
    %227 = vmatpush1.msra.mxu0 %v66
    %228 = vmatprep.subr.mxu0 0.0
    %229 = vmatpush1.msra.mxu0 %v67
    %230 = vmatprep.subr.mxu0 0.0
    %231 = vmatpush1.msra.mxu0 %v68
    %232 = vmatprep.subr.mxu0 0.0
    %233 = vmatpush1.msra.mxu0 %v69
    %234 = vmatprep.subr.mxu0 0.0
    %235 = vmatpush1.msra.mxu0 %v70
    %236 = vmatprep.subr.mxu0 0.0
    %237 = vmatpush1.msra.mxu0 %v71
    %238 = vmatprep.subr.mxu0 0.0
    %239 = vmatpush1.msra.mxu0 %v72
    %240 = vmatprep.subr.mxu0 0.0
    %241 = vmatpush1.msra.mxu0 %v73
    %242 = vmatprep.subr.mxu0 0.0
    %243 = vmatpush1.msra.mxu0 %v74
    %244 = vmatprep.subr.mxu0 0.0
    %245 = vmatpush1.msra.mxu0 %v75
    %246 = vmatprep.subr.mxu0 0.0
    %247 = vmatpush1.msra.mxu0 %v76
    %248 = vmatprep.subr.mxu0 0.0
    %249 = vmatpush1.msra.mxu0 %v77
    %250 = vmatprep.subr.mxu0 0.0
    %251 = vmatpush1.msra.mxu0 %v78
    %252 = vmatprep.subr.mxu0 0.0
    %253 = vmatpush1.msra.mxu0 %v79
    %254 = vmatprep.subr.mxu0 0.0
    %255 = vmatpush1.msra.mxu0 %v80
    %256 = vmatprep.subr.mxu0 0.0
    %257 = vmatpush1.msra.mxu0 %v81
    %258 = vmatprep.subr.mxu0 0.0
    %259 = vmatpush1.msra.mxu0 %v82
    %260 = vmatprep.subr.mxu0 0.0
    %261 = vmatpush1.msra.mxu0 %v83
    %262 = vmatprep.subr.mxu0 0.0
    %263 = vmatpush1.msra.mxu0 %v84
    %264 = vmatprep.subr.mxu0 0.0
    %265 = vmatpush1.msra.mxu0 %v85
    %266 = vmatprep.subr.mxu0 0.0
    %267 = vmatpush1.msra.mxu0 %v86
    %268 = vmatprep.subr.mxu0 0.0
    %269 = vmatpush1.msra.mxu0 %v87
    %270 = vmatprep.subr.mxu0 0.0
    %271 = vmatpush1.msra.mxu0 %v88
    %272 = vmatprep.subr.mxu0 0.0
    %273 = vmatpush1.msra.mxu0 %v89
    %274 = vmatprep.subr.mxu0 0.0
    %275 = vmatpush1.msra.mxu0 %v90
    %276 = vmatprep.subr.mxu0 0.0
    %277 = vmatpush1.msra.mxu0 %v91
    %278 = vmatprep.subr.mxu0 0.0
    %279 = vmatpush1.msra.mxu0 %v92
    %280 = vmatprep.subr.mxu0 0.0
    %281 = vmatpush1.msra.mxu0 %v93
    %282 = vmatprep.subr.mxu0 0.0
    %283 = vmatpush1.msra.mxu0 %v94
    %284 = vmatprep.mubr.f32.mxu0 %v27
    %285 = vmatmul.mubr.f32.gmra.mrb[0].mxu0 %v26
    %v286 = vpop.f32.mrb[0].mxu0
    %v287 = vadd.f32 %v217, %v286
    %v288 = vpop.f32.mrb[0].mxu0
    %289 = vdwg.mxu0
    %290 = vmatprep.subr.mxu0 0.0
    %291 = vmatpush1.msra.mxu0 %v95
    %292 = vmatprep.subr.mxu0 0.0
    %293 = vmatpush1.msra.mxu0 %v96
    %294 = vmatprep.subr.mxu0 0.0
    %295 = vmatpush1.msra.mxu0 %v97
    %296 = vmatprep.subr.mxu0 0.0
    %297 = vmatpush1.msra.mxu0 %v98
    %298 = vmatprep.subr.mxu0 0.0
    %299 = vmatpush1.msra.mxu0 %v99
    %300 = vmatprep.subr.mxu0 0.0
    %301 = vmatpush1.msra.mxu0 %v100
    %302 = vmatprep.subr.mxu0 0.0
    %303 = vmatpush1.msra.mxu0 %v101
    %304 = vmatprep.subr.mxu0 0.0
    %305 = vmatpush1.msra.mxu0 %v102
    %306 = vmatprep.subr.mxu0 0.0
    %307 = vmatpush1.msra.mxu0 %v103
    %308 = vmatprep.subr.mxu0 0.0
    %309 = vmatpush1.msra.mxu0 %v104
    %310 = vmatprep.subr.mxu0 0.0
    %311 = vmatpush1.msra.mxu0 %v105
    %312 = vmatprep.subr.mxu0 0.0
    %313 = vmatpush1.msra.mxu0 %v106
    %314 = vmatprep.subr.mxu0 0.0
    %315 = vmatpush1.msra.mxu0 %v107
    %316 = vmatprep.subr.mxu0 0.0
    %317 = vmatpush1.msra.mxu0 %v108
    %318 = vmatprep.subr.mxu0 0.0
    %319 = vmatpush1.msra.mxu0 %v109
    %320 = vmatprep.subr.mxu0 0.0
    %321 = vmatpush1.msra.mxu0 %v110
    %322 = vmatprep.subr.mxu0 0.0
    %323 = vmatpush1.msra.mxu0 %v111
    %324 = vmatprep.subr.mxu0 0.0
    %325 = vmatpush1.msra.mxu0 %v112
    %326 = vmatprep.subr.mxu0 0.0
    %327 = vmatpush1.msra.mxu0 %v113
    %328 = vmatprep.subr.mxu0 0.0
    %329 = vmatpush1.msra.mxu0 %v114
    %330 = vmatprep.subr.mxu0 0.0
    %331 = vmatpush1.msra.mxu0 %v115
    %332 = vmatprep.subr.mxu0 0.0
    %333 = vmatpush1.msra.mxu0 %v116
    %334 = vmatprep.subr.mxu0 0.0
    %335 = vmatpush1.msra.mxu0 %v117
    %336 = vmatprep.subr.mxu0 0.0
    %337 = vmatpush1.msra.mxu0 %v118
    %338 = vmatprep.subr.mxu0 0.0
    %339 = vmatpush1.msra.mxu0 %v119
    %340 = vmatprep.subr.mxu0 0.0
    %341 = vmatpush1.msra.mxu0 %v120
    %342 = vmatprep.subr.mxu0 0.0
    %343 = vmatpush1.msra.mxu0 %v121
    %344 = vmatprep.subr.mxu0 0.0
    %345 = vmatpush1.msra.mxu0 %v122
    %346 = vmatprep.subr.mxu0 0.0
    %347 = vmatpush1.msra.mxu0 %v123
    %348 = vmatprep.subr.mxu0 0.0
    %349 = vmatpush1.msra.mxu0 %v124
    %350 = vmatprep.subr.mxu0 0.0
    %351 = vmatpush1.msra.mxu0 %v125
    %352 = vmatprep.subr.mxu0 0.0
    %353 = vmatpush1.msra.mxu0 %v126
    %354 = vmatprep.mubr.f32.mxu0 %v29
    %355 = vmatmul.mubr.f32.gmra.mrb[0].mxu0 %v28
    %v356 = vpop.f32.mrb[0].mxu0
    %v357 = vadd.f32 %v287, %v356
    %v358 = vpop.f32.mrb[0].mxu0
    %359 = vdwg.mxu0
    %360 = vmatprep.subr.mxu0 0.0
    %361 = vmatpush1.msra.mxu0 %v127
    %362 = vmatprep.subr.mxu0 0.0
    %363 = vmatpush1.msra.mxu0 %v128
    %364 = vmatprep.subr.mxu0 0.0
    %365 = vmatpush1.msra.mxu0 %v129
    %366 = vmatprep.subr.mxu0 0.0
    %367 = vmatpush1.msra.mxu0 %v130
    %368 = vmatprep.subr.mxu0 0.0
    %369 = vmatpush1.msra.mxu0 %v131
    %370 = vmatprep.subr.mxu0 0.0
    %371 = vmatpush1.msra.mxu0 %v132
    %372 = vmatprep.subr.mxu0 0.0
    %373 = vmatpush1.msra.mxu0 %v133
    %374 = vmatprep.subr.mxu0 0.0
    %375 = vmatpush1.msra.mxu0 %v134
    %376 = vmatprep.subr.mxu0 0.0
    %377 = vmatpush1.msra.mxu0 %v135
    %378 = vmatprep.subr.mxu0 0.0
    %379 = vmatpush1.msra.mxu0 %v136
    %380 = vmatprep.subr.mxu0 0.0
    %381 = vmatpush1.msra.mxu0 %v137
    %382 = vmatprep.subr.mxu0 0.0
    %383 = vmatpush1.msra.mxu0 %v138
    %384 = vmatprep.subr.mxu0 0.0
    %385 = vmatpush1.msra.mxu0 %v139
    %386 = vmatprep.subr.mxu0 0.0
    %387 = vmatpush1.msra.mxu0 %v140
    %388 = vmatprep.subr.mxu0 0.0
    %389 = vmatpush1.msra.mxu0 %v141
    %390 = vmatprep.subr.mxu0 0.0
    %391 = vmatpush1.msra.mxu0 %v142
    %392 = vmatprep.subr.mxu0 0.0
    %393 = vmatpush1.msra.mxu0 0.0
    %394 = vmatprep.subr.mxu0 0.0
    %395 = vmatpush1.msra.mxu0 0.0
    %396 = vmatprep.subr.mxu0 0.0
    %397 = vmatpush1.msra.mxu0 0.0
    %398 = vmatprep.subr.mxu0 0.0
    %399 = vmatpush1.msra.mxu0 0.0
    %400 = vmatprep.subr.mxu0 0.0
    %401 = vmatpush1.msra.mxu0 0.0
    %402 = vmatprep.subr.mxu0 0.0
    %403 = vmatpush1.msra.mxu0 0.0
    %404 = vmatprep.subr.mxu0 0.0
    %405 = vmatpush1.msra.mxu0 0.0
    %406 = vmatprep.subr.mxu0 0.0
    %407 = vmatpush1.msra.mxu0 0.0
    %408 = vmatprep.subr.mxu0 0.0
    %409 = vmatpush1.msra.mxu0 0.0
    %410 = vmatprep.subr.mxu0 0.0
    %411 = vmatpush1.msra.mxu0 0.0
    %412 = vmatprep.subr.mxu0 0.0
    %413 = vmatpush1.msra.mxu0 0.0
    %414 = vmatprep.subr.mxu0 0.0
    %415 = vmatpush1.msra.mxu0 0.0
    %416 = vmatprep.subr.mxu0 0.0
    %417 = vmatpush1.msra.mxu0 0.0
    %418 = vmatprep.subr.mxu0 0.0
    %419 = vmatpush1.msra.mxu0 0.0
    %420 = vmatprep.subr.mxu0 0.0
    %421 = vmatpush1.msra.mxu0 0.0
    %422 = vmatprep.subr.mxu0 0.0
    %423 = vmatpush1.msra.mxu0 0.0
    %424 = vmatprep.mubr.f32.mxu0 0.0
    %425 = vmatmul.mubr.f32.gmra.mrb[0].mxu0 %v30
    %v426 = vpop.f32.mrb[0].mxu0
    %v427 = vadd.f32 %v357, %v426
    %v428 = vpop.f32.mrb[0].mxu0
    %429 = vdwg.mxu0
    %v430 = vmax.f32 %v427, 0.0
    %vm431 = vcmask 261120
    %432 = vst.msk [vmem:[#allocation2] sm:$0xff] %vm431, %v430
    %s433 = smul.u32 0, 8
    %v434 = vlaneseq
    %v435 = vshrl.u32 %v434, 7
    %v436 = vstv %s433
    %v437 = vadd.s32 %v436, %v435
    %vm438 = vcmp.lt.s32.totalorder %v437, 8
    %v439 = vsel %vm438, %v430, 0.0
    %v440 = vld [vmem:[#allocation4] sm:$0x3]
    %v441 = vsel %vm431, %v439, 0.0
    %v442 = vrot.slane %v441, 4
    %v443 = vadd.f32 %v441, %v442
    %v444 = vrot.slane %v443, 2
    %v445 = vadd.f32 %v443, %v444
    %v446 = vrot.slane %v445, 1
    %v447 = vadd.f32 %v445, %v446
    %v448 = vmul.f32 %v439, %v439
    %v449 = vsel %vm431, %v448, 0.0
    %v450 = vrot.slane %v449, 4
    %v451 = vadd.f32 %v449, %v450
    %v452 = vrot.slane %v451, 2
    %v453 = vadd.f32 %v451, %v452
    %v454 = vrot.slane %v453, 1
    %v455 = vadd.f32 %v453, %v454
    %vm456 = vcmask 1040384
    %v457 = vsel %vm456, %v447, %v455
    %v458 = vadd.f32 %v440, %v457
    %vm459 = vcmask 254976
    %460 = vst.msk [vmem:[#allocation4] sm:$0x3] %vm459, %v458
    // Predicated region
    $region18: #{tpu_custom_call.1} parent=1 // pred_check
      _
    $region19: #{tpu_custom_call.1} parent=1 // pred_check_branch
      %462 = sbr.rel (0) target = $region21
    $region20: #{tpu_custom_call.1} parent=1 // pred_region
      %s464 = ssub.s32 128, 128
      %465 = vsyncadd [#allocation3], %s464
      %s467 = sshll.u32 [#allocation2], 4
      %s468 = int_to_ptr.vmem [resolvable:$true] %s467
      %470 = dma.vmem_to_hbm [thread:$0]  %s468, 128, %s3, [#allocation3]
    $region21: #{tpu_custom_call.1} parent=1 // pred_fallthru
      _
    // Predicated region
    $region22: #{tpu_custom_call.1} parent=1 // pred_check
      _
    $region23: #{tpu_custom_call.1} parent=1 // pred_check_branch
      %472 = sbr.rel (0) target = $region25
    $region24: #{tpu_custom_call.1} parent=1 // pred_region
      %s474 = ssub.s32 32, 32
      %475 = vsyncadd [#allocation5], %s474
      %s477 = sshll.u32 [#allocation4], 4
      %s478 = int_to_ptr.vmem [resolvable:$true] %s477
      %480 = dma.vmem_to_hbm [thread:$0]  %s478, 32, %s4, [#allocation5]
    $region25: #{tpu_custom_call.1} parent=1 // pred_fallthru
      _
    // Predicated region
    $region26: #{tpu_custom_call.1} parent=1 // pred_check
      _
    $region27: #{tpu_custom_call.1} parent=1 // pred_check_branch
      %482 = sbr.rel (0) target = $region29
    $region28: #{tpu_custom_call.1} parent=1 // pred_region
      %483 = dma.done [#allocation3], 128
    $region29: #{tpu_custom_call.1} parent=1 // pred_fallthru
      _
    // Predicated region
    $region30: #{tpu_custom_call.1} parent=1 // pred_check
      _
    $region31: #{tpu_custom_call.1} parent=1 // pred_check_branch
      %485 = sbr.rel (0) target = $region33
    $region32: #{tpu_custom_call.1} parent=1 // pred_region
      %486 = dma.done [#allocation5], 32
    $region33: #{tpu_custom_call.1} parent=1 // pred_fallthru
      _
    %487 = vsyncpa [#allocation3], 1
    %488 = vsyncpa [#allocation5], 1

</llo_original>
